<compile_context>
chip_gen: v7x
topology: tpu7x:2x2x1
jax: 0.10.0
libtpu: 0.0.40
codegen_flags: <defaults>
</compile_context>

<pallas_src>
import functools
import math

import jax
import jax.numpy as jnp
from jax.experimental import pallas as pl
from jax.experimental.pallas import tpu as pltpu

# acos(c) * 180/pi < 5   <=>   cos(5 deg) < c <= 1   (NaN / degenerate -> False, like torch)
_COS_5_DEG = math.cos(5.0 * math.pi / 180.0)
_LANE = 128


def _round_up(x, m):
    return ((x + m - 1) // m) * m


def _min_mse_kernel(pred_ref, label_ref, out_ref, *, weight, k, d):
    """One batch tile (samples on lanes): weighted per-mode MSE, gating, min over modes."""
    # Native-dtype loads; cast in VMEM (keeps HBM reads at the source width).
    p = pred_ref[...].astype(jnp.float32)        # (M, K, TB)
    l = label_ref[...].astype(jnp.float32)       # (K, TB)
    tb = p.shape[-1]

    # ---- per-mode weighted MSE (K on sublanes, samples on lanes) --------------
    diff = p - l[None, :, :]
    se = diff * diff                             # explicit square (no lax.pow)
    kidx = jax.lax.broadcasted_iota(jnp.int32, (1, k, tb), 1)
    wvec = jnp.where(kidx % d == 0, jnp.float32(weight), jnp.float32(1.0))  # SE[..., 0] *= weight
    mse = jnp.sum(se * wvec, axis=1) / 12.0      # (M, TB); literal /12 as in the spec

    # ---- candidate gating from last-timestep endpoint directions --------------
    pe = p[:, k - d:, :]                         # (M, D, TB) predicted endpoints
    le = l[k - d:, :]                            # (D, TB)    label endpoint
    dot = jnp.sum(pe * le[None, :, :], axis=1)                   # (M, TB)
    pe_norm = jnp.sqrt(jnp.sum(pe * pe, axis=1))                 # (M, TB)  (EUP sqrt)
    le_norm = jnp.sqrt(jnp.sum(le * le, axis=0, keepdims=True))  # (1, TB)
    norm_prod = pe_norm * le_norm                                # (M, TB)

    # acos(dot/(|pe||le|)) * 180/pi < 5  <=>  cos5*|pe||le| < dot <= |pe||le|.
    # Division-free; zero norms give dot == norm_prod == 0 -> not a candidate,
    # matching torch's 0/0 -> NaN -> acos(NaN) -> (NaN < 5) == False path.
    cand = (dot > _COS_5_DEG * norm_prod) & (dot <= norm_prod)   # (M, TB)
    no_cand = jnp.sum(cand.astype(jnp.float32), axis=0, keepdims=True) == 0.0  # (1, TB)
    stationary = le_norm <= 0.1                                  # (1, TB)
    cand = cand | no_cand | stationary
    cand_w = jnp.where(cand, 1.0, 10000.0)

    # ---- min over modes (sublane min per lane) -> lane-dense output row -------
    out_ref[...] = jnp.min(mse * cand_w, axis=0, keepdims=True)  # (1, TB)


def min_mse_loss(waypoint_pred, label_waypoint, *, weight=1.0, batch_tile=4096):
    """Pallas implementation of MinMSELoss.forward (returns the scalar loss)."""
    B, M, T, D = waypoint_pred.shape
    K = T * D

    # Batch-on-lanes layout: pred (M, K, B), label (K, B).  No dtype cast here
    # (the kernel casts after the HBM->VMEM copy).
    pred = jnp.transpose(waypoint_pred.reshape(B, M, K), (1, 2, 0))
    label = jnp.transpose(label_waypoint.reshape(B, K), (1, 0))

    # Lane tile: multiple of 128, capped by batch_tile; keep >= 2 grid steps once
    # the batch spans two lane groups so "parallel" shards across both TCs (v7x).
    b_lanes = _round_up(B, _LANE)
    tb = min(batch_tile, b_lanes)
    if b_lanes >= 2 * _LANE:
        tb = min(tb, _round_up((B + 1) // 2, _LANE))
    tb = max(_LANE, (tb // _LANE) * _LANE)
    B_pad = _round_up(B, tb)
    if B_pad != B:
        # Padded samples have pred == label == 0 -> per-sample min is exactly 0.
        pred = jnp.pad(pred, ((0, 0), (0, 0), (0, B_pad - B)))
        label = jnp.pad(label, ((0, 0), (0, B_pad - B)))
    num_tiles = B_pad // tb

    kernel = functools.partial(_min_mse_kernel, weight=float(weight), k=K, d=D)

    row_min = pl.pallas_call(
        kernel,
        out_shape=jax.ShapeDtypeStruct((num_tiles, tb), jnp.float32),
        grid_spec=pltpu.PrefetchScalarGridSpec(
            num_scalar_prefetch=0,
            grid=(num_tiles,),
            in_specs=[pl.BlockSpec((M, K, tb), lambda i: (0, 0, i)),
                      pl.BlockSpec((K, tb), lambda i: (0, i))],
            out_specs=pl.BlockSpec((1, tb), lambda i: (i, 0)),
        ),
        compiler_params=pltpu.CompilerParams(
            dimension_semantics=("parallel",)),    # independent tiles -> both TCs on v7x
    )(pred, label)

    # Padded lanes contribute exactly 0, so the tiny final reduction (B_pad floats)
    # needs no slicing.
    return jnp.sum(row_min)


def _reference_min_mse(waypoint_pred, label_waypoint, weight):
    """Pure-JAX reference mirroring the PyTorch MinMSELoss.forward op-for-op."""
    wp = waypoint_pred.astype(jnp.float32)
    lbl = label_waypoint.astype(jnp.float32)[:, None]              # (B, 1, T, D)
    B, M, T, D = wp.shape

    pred_end = wp[:, :, -1]                                        # (B, M, D)
    label_end = lbl[:, :, -1]                                      # (B, 1, D)
    unit_pred = pred_end / jnp.linalg.norm(pred_end, axis=2, keepdims=True)
    unit_label = label_end / jnp.linalg.norm(label_end, axis=2, keepdims=True)
    label_end_norm = jnp.linalg.norm(label_end, axis=2, keepdims=True)
    cos_sim = jnp.sum(unit_pred * unit_label, axis=2)              # (B, M)
    deg = jnp.arccos(cos_sim) * (180.0 / jnp.pi)
    cand = deg < 5.0
    no_cand = jnp.sum(cand, axis=1) == 0
    stationary = (label_end_norm <= 0.1).reshape(B)
    cand = cand | no_cand[:, None] | stationary[:, None]
    cand_w = jnp.where(cand, 1.0, 10000.0)

    se = (wp - lbl) ** 2
    se = se.at[:, :, :, 0].multiply(weight)
    mse = jnp.sum(se, axis=(2, 3)) / 12.0
    mse = mse * cand_w
    min_idx = jnp.argmin(mse, axis=1)
    min_mse = mse[jnp.arange(B), min_idx]
    return jnp.sum(min_mse)


if __name__ == "__main__":
    key = jax.random.PRNGKey(0)
    k1, k2 = jax.random.split(key)

    B, M, T, D = 2, 6, 6, 2          # modes=6, 6 waypoints of (x, y); T*D = 12
    weight = 2.5                     # exercise the coordinate-0 weighting path

    waypoint_pred = jax.random.normal(k1, (B, M, T, D), dtype=jnp.float32)
    label_waypoint = jax.random.normal(k2, (B, T, D), dtype=jnp.float32)

    pred = (waypoint_pred, None)                     # module takes (waypoint_pred, _)
    batch = {"label_waypoint": label_waypoint}

    out = min_mse_loss(pred[0], batch["label_waypoint"], weight=weight)
    out = jax.block_until_ready(out)

    ref = _reference_min_mse(waypoint_pred, label_waypoint, weight)
    assert jnp.allclose(out, ref, rtol=1e-5, atol=1e-5), (out, ref)

    print("KERNEL_OK")
</pallas_src>

<mosaic_0001>
module attributes {stable_mosaic.version = 11 : i64} {
  func.func @_min_mse_kernel(%arg0: i32, %arg1: memref<6x12x128xf32, #tpu.memory_space<vmem>>, %arg2: memref<12x128xf32, #tpu.memory_space<vmem>>, %arg3: memref<1x128xf32, #tpu.memory_space<vmem>>) attributes {dimension_semantics = [#tpu.dimension_semantics<parallel>], iteration_bounds = array<i64: 1>, scalar_prefetch = 0 : i64, scratch_operands = 0 : i64, tpu.core_type = #tpu.core_type<tc>, window_params = [{transform_indices = @transform_0, window_bounds = array<i64: 6, 12, 128>}, {transform_indices = @transform_1, window_bounds = array<i64: 12, 128>}, {transform_indices = @transform_2, window_bounds = array<i64: 1, 128>}]} {
    %c0 = arith.constant 0 : index
    %c0_0 = arith.constant 0 : index
    %c0_1 = arith.constant 0 : index
    %0 = vector.load %arg1[%c0, %c0_0, %c0_1] : memref<6x12x128xf32, #tpu.memory_space<vmem>>, vector<6x12x128xf32>
    %c0_2 = arith.constant 0 : index
    %c0_3 = arith.constant 0 : index
    %1 = vector.load %arg2[%c0_2, %c0_3] : memref<12x128xf32, #tpu.memory_space<vmem>>, vector<12x128xf32>
    %2 = vector.shape_cast %1 : vector<12x128xf32> to vector<1x12x128xf32>
    %3 = vector.broadcast %2 : vector<1x12x128xf32> to vector<6x12x128xf32>
    %4 = arith.subf %0, %3 : vector<6x12x128xf32>
    %5 = arith.mulf %4, %4 : vector<6x12x128xf32>
    %6 = tpu.iota {dimensions = array<i32: 1>} : vector<1x12x128xi32>
    %c2_i32 = arith.constant 2 : i32
    %c0_i32 = arith.constant 0 : i32
    %7 = arith.cmpi eq, %c2_i32, %c0_i32 : i32
    %c1_i32 = arith.constant 1 : i32
    %8 = arith.select %7, %c1_i32, %c2_i32 : i32
    %9 = vector.broadcast %8 : i32 to vector<1x12x128xi32>
    %10 = arith.remsi %6, %9 : vector<1x12x128xi32>
    %c0_i32_4 = arith.constant 0 : i32
    %11 = vector.broadcast %c0_i32_4 : i32 to vector<1x12x128xi32>
    %12 = arith.cmpi ne, %10, %11 : vector<1x12x128xi32>
    %c0_i32_5 = arith.constant 0 : i32
    %13 = vector.broadcast %c0_i32_5 : i32 to vector<1x12x128xi32>
    %14 = arith.cmpi slt, %10, %13 : vector<1x12x128xi32>
    %c0_i32_6 = arith.constant 0 : i32
    %15 = arith.cmpi slt, %8, %c0_i32_6 : i32
    %16 = vector.broadcast %15 : i1 to vector<1x12x128xi1>
    %17 = vector.broadcast %16 : vector<1x12x128xi1> to vector<1x12x128xi1>
    %18 = arith.xori %14, %17 : vector<1x12x128xi1>
    %19 = arith.andi %18, %12 : vector<1x12x128xi1>
    %20 = vector.broadcast %8 : i32 to vector<1x12x128xi32>
    %21 = arith.addi %10, %20 : vector<1x12x128xi32>
    %22 = arith.select %19, %21, %10 : vector<1x12x128xi1>, vector<1x12x128xi32>
    %c0_i32_7 = arith.constant 0 : i32
    %23 = vector.broadcast %c0_i32_7 : i32 to vector<1x12x128xi32>
    %24 = arith.cmpi eq, %22, %23 : vector<1x12x128xi32>
    %cst = arith.constant 2.500000e+00 : f32
    %cst_8 = arith.constant 1.000000e+00 : f32
    %25 = vector.broadcast %cst : f32 to vector<1x12x128xf32>
    %26 = vector.broadcast %cst_8 : f32 to vector<1x12x128xf32>
    %27 = arith.select %24, %25, %26 : vector<1x12x128xi1>, vector<1x12x128xf32>
    %28 = vector.broadcast %27 : vector<1x12x128xf32> to vector<6x12x128xf32>
    %29 = arith.mulf %5, %28 : vector<6x12x128xf32>
    %cst_9 = arith.constant dense<0.000000e+00> : vector<6x128xf32>
    %30 = vector.multi_reduction <add>, %29, %cst_9 [1] : vector<6x12x128xf32> to vector<6x128xf32>
    %cst_10 = arith.constant 1.200000e+01 : f32
    %31 = vector.broadcast %cst_10 : f32 to vector<6x128xf32>
    %32 = arith.divf %30, %31 : vector<6x128xf32>
    %33 = vector.extract_strided_slice %0 {offsets = [0, 10, 0], sizes = [6, 2, 128], strides = [1, 1, 1]} : vector<6x12x128xf32> to vector<6x2x128xf32>
    %34 = vector.extract_strided_slice %1 {offsets = [10, 0], sizes = [2, 128], strides = [1, 1]} : vector<12x128xf32> to vector<2x128xf32>
    %35 = vector.shape_cast %34 : vector<2x128xf32> to vector<1x2x128xf32>
    %36 = vector.broadcast %35 : vector<1x2x128xf32> to vector<6x2x128xf32>
    %37 = arith.mulf %33, %36 : vector<6x2x128xf32>
    %cst_11 = arith.constant dense<0.000000e+00> : vector<6x128xf32>
    %38 = vector.multi_reduction <add>, %37, %cst_11 [1] : vector<6x2x128xf32> to vector<6x128xf32>
    %39 = arith.mulf %33, %33 : vector<6x2x128xf32>
    %cst_12 = arith.constant dense<0.000000e+00> : vector<6x128xf32>
    %40 = vector.multi_reduction <add>, %39, %cst_12 [1] : vector<6x2x128xf32> to vector<6x128xf32>
    %41 = math.sqrt %40 : vector<6x128xf32>
    %42 = arith.mulf %34, %34 : vector<2x128xf32>
    %cst_13 = arith.constant dense<0.000000e+00> : vector<128xf32>
    %43 = vector.multi_reduction <add>, %42, %cst_13 [0] : vector<2x128xf32> to vector<128xf32>
    %44 = vector.shape_cast %43 : vector<128xf32> to vector<1x128xf32>
    %45 = math.sqrt %44 : vector<1x128xf32>
    %46 = vector.broadcast %45 : vector<1x128xf32> to vector<6x128xf32>
    %47 = arith.mulf %41, %46 : vector<6x128xf32>
    %cst_14 = arith.constant 0.99619472 : f32
    %48 = vector.broadcast %cst_14 : f32 to vector<6x128xf32>
    %49 = arith.mulf %48, %47 : vector<6x128xf32>
    %50 = arith.cmpf ogt, %38, %49 : vector<6x128xf32>
    %51 = arith.cmpf ole, %38, %47 : vector<6x128xf32>
    %52 = arith.andi %50, %51 : vector<6x128xi1>
    %53 = arith.extui %52 : vector<6x128xi1> to vector<6x128xi32>
    %54 = arith.sitofp %53 : vector<6x128xi32> to vector<6x128xf32>
    %cst_15 = arith.constant dense<0.000000e+00> : vector<128xf32>
    %55 = vector.multi_reduction <add>, %54, %cst_15 [0] : vector<6x128xf32> to vector<128xf32>
    %56 = vector.shape_cast %55 : vector<128xf32> to vector<1x128xf32>
    %cst_16 = arith.constant 0.000000e+00 : f32
    %57 = vector.broadcast %cst_16 : f32 to vector<1x128xf32>
    %58 = arith.cmpf oeq, %56, %57 : vector<1x128xf32>
    %cst_17 = arith.constant 1.000000e-01 : f32
    %59 = vector.broadcast %cst_17 : f32 to vector<1x128xf32>
    %60 = arith.cmpf ole, %45, %59 : vector<1x128xf32>
    %61 = vector.broadcast %58 : vector<1x128xi1> to vector<6x128xi1>
    %62 = arith.ori %52, %61 : vector<6x128xi1>
    %63 = vector.broadcast %60 : vector<1x128xi1> to vector<6x128xi1>
    %64 = arith.ori %62, %63 : vector<6x128xi1>
    %cst_18 = arith.constant 1.000000e+00 : f32
    %cst_19 = arith.constant 1.000000e+04 : f32
    %65 = vector.broadcast %cst_18 : f32 to vector<6x128xf32>
    %66 = vector.broadcast %cst_19 : f32 to vector<6x128xf32>
    %67 = arith.select %64, %65, %66 : vector<6x128xi1>, vector<6x128xf32>
    %68 = arith.mulf %32, %67 : vector<6x128xf32>
    %cst_20 = arith.constant dense<0x7F800000> : vector<128xf32>
    %69 = vector.multi_reduction <minimumf>, %68, %cst_20 [0] : vector<6x128xf32> to vector<128xf32>
    %70 = vector.shape_cast %69 : vector<128xf32> to vector<1x128xf32>
    %c0_21 = arith.constant 0 : index
    %c0_22 = arith.constant 0 : index
    %71 = vector.load %arg3[%c0_21, %c0_22] : memref<1x128xf32, #tpu.memory_space<vmem>>, vector<1x128xf32>
    tpu.vector_store %arg3[%c0_21, %c0_22], %70 {strides = array<i32>} : memref<1x128xf32, #tpu.memory_space<vmem>>, vector<1x128xf32>,
    return
  }
  func.func @transform_0(%arg0: i32) -> (i32, i32, i32) {
    %c0_i32 = arith.constant 0 : i32
    %c0_i32_0 = arith.constant 0 : i32
    %c0_i32_1 = arith.constant 0 : i32
    return %c0_i32, %c0_i32_0, %arg0 : i32, i32, i32
  }
  func.func @transform_1(%arg0: i32) -> (i32, i32) {
    %c0_i32 = arith.constant 0 : i32
    %c0_i32_0 = arith.constant 0 : i32
    return %c0_i32, %arg0 : i32, i32
  }
  func.func @transform_2(%arg0: i32) -> (i32, i32) {
    %c0_i32 = arith.constant 0 : i32
    %c0_i32_0 = arith.constant 0 : i32
    return %arg0, %c0_i32 : i32, i32
  }
}

</mosaic_0001>

<llo_original>
// kernel: tpu_custom_call.1
$region0: #{tpu_custom_call.1}
  #allocation0 [shape = 'u32[]', space=smem, size = 0x4, offset = 0x4, fixed_abs, tag = 'smem constant byte address 0x4 - core index']
  #allocation1 [shape = 'u32[144,128]{1,0:T(1,128)}', space=vmem, size = 0x12000, scoped, tag = 'internal scratch']
  %s0 = inlined_call_operand.hbm [shape: f32[6,12,128], index: 0, kind: input, shape index: {}]
  %s1 = inlined_call_operand.hbm [shape: f32[12,128], index: 1, kind: input, shape index: {}]
  %s2 = inlined_call_operand.hbm [shape: f32[1,128], index: 2, kind: output, shape index: {}]
  %s3 = sld [smem:[#allocation0]]
  $region26: #{tpu_custom_call.1} parent=0
    _
  %s5 = ssub.s32 1, %s3
  %s6 = scalar_select 0, %s5, %s3
  $region1: #{tpu_custom_call.1} parent=0
    #allocation2 [shape = 'u8[49152]{0}', space=vmem, size = 0xc000, scoped, tag = 'input window, operand 0, single buffered']
    #allocation3 [shape = 's32[1]{0}', space=sflag, size = 0x4, scoped, tag = 'scoped memory for tpu_custom_call.1']
    #allocation4 [shape = 's32[1]{0}', space=sflag, size = 0x4, scoped, tag = 'scoped memory for tpu_custom_call.1']
    #allocation5 [shape = 'u8[8192]{0}', space=vmem, size = 0x2000, scoped, tag = 'input window, operand 1, single buffered']
    #allocation6 [shape = 's32[1]{0}', space=sflag, size = 0x4, scoped, tag = 'scoped memory for tpu_custom_call.1']
    #allocation7 [shape = 'u8[512]{0}', space=vmem, size = 0x400, scoped, tag = 'output window, operand 0, single buffered']
    %7 = vsyncpa [#allocation3], 0
    %8 = vsyncpa [#allocation6], 0
    %9 = vsyncpa [#allocation4], 0
    // Predicated region
    $region2: #{tpu_custom_call.1} parent=1 // pred_check
      _
    $region3: #{tpu_custom_call.1} parent=1 // pred_check_branch
      %11 = sbr.rel (0) target = $region5
    $region4: #{tpu_custom_call.1} parent=1 // pred_region
      %s13 = ssub.s32 1536, 1536
      %14 = vsyncadd [#allocation3], %s13
      %s15 = sshll.u32 [#allocation2], 4
      %s16 = int_to_ptr.vmem [resolvable:$true] %s15
      %21 = dma.hbm_to_vmem [thread:$0]  %s0, 1536, %s16, [#allocation3], 128, 128, 8
    $region5: #{tpu_custom_call.1} parent=1 // pred_fallthru
      _
    // Predicated region
    $region6: #{tpu_custom_call.1} parent=1 // pred_check
      _
    $region7: #{tpu_custom_call.1} parent=1 // pred_check_branch
      %23 = sbr.rel (0) target = $region9
    $region8: #{tpu_custom_call.1} parent=1 // pred_region
      %s25 = ssub.s32 256, 256
      %26 = vsyncadd [#allocation6], %s25
      %s27 = sshll.u32 [#allocation5], 4
      %s28 = int_to_ptr.vmem [resolvable:$true] %s27
      %33 = dma.hbm_to_vmem [thread:$0]  %s1, 256, %s28, [#allocation6], 128, 128, 8
    $region9: #{tpu_custom_call.1} parent=1 // pred_fallthru
      _
    // Predicated region
    $region10: #{tpu_custom_call.1} parent=1 // pred_check
      _
    $region11: #{tpu_custom_call.1} parent=1 // pred_check_branch
      %35 = sbr.rel (0) target = $region13
    $region12: #{tpu_custom_call.1} parent=1 // pred_region
      %36 = dma.done [#allocation3], 1536
    $region13: #{tpu_custom_call.1} parent=1 // pred_fallthru
      _
    // Predicated region
    $region14: #{tpu_custom_call.1} parent=1 // pred_check
      _
    $region15: #{tpu_custom_call.1} parent=1 // pred_check_branch
      %38 = sbr.rel (0) target = $region17
    $region16: #{tpu_custom_call.1} parent=1 // pred_region
      %39 = dma.done [#allocation6], 256
    $region17: #{tpu_custom_call.1} parent=1 // pred_fallthru
      _
    %v40 = vld [vmem:[#allocation2] sm:$0xff]
    %v41 = vld [vmem:[#allocation2 + $0x8] sm:$0xf]
    %v42 = vld [vmem:[#allocation2 + $0x10] sm:$0xff]
    %v43 = vld [vmem:[#allocation2 + $0x18] sm:$0xf]
    %v44 = vld [vmem:[#allocation2 + $0x20] sm:$0xff]
    %v45 = vld [vmem:[#allocation2 + $0x28] sm:$0xf]
    %v46 = vld [vmem:[#allocation2 + $0x30] sm:$0xff]
    %v47 = vld [vmem:[#allocation2 + $0x38] sm:$0xf]
    %v48 = vld [vmem:[#allocation2 + $0x40] sm:$0xff]
    %v49 = vld [vmem:[#allocation2 + $0x48] sm:$0xf]
    %v50 = vld [vmem:[#allocation2 + $0x50] sm:$0xff]
    %v51 = vld [vmem:[#allocation2 + $0x58] sm:$0xf]
    %v52 = vld [vmem:[#allocation5] sm:$0xff]
    %v53 = vld [vmem:[#allocation5 + $0x8] sm:$0xf]
    %v54 = vsub.f32 %v40, %v52
    %v55 = vsub.f32 %v41, %v53
    %v56 = vsub.f32 %v42, %v52
    %v57 = vsub.f32 %v43, %v53
    %v58 = vsub.f32 %v44, %v52
    %v59 = vsub.f32 %v45, %v53
    %v60 = vsub.f32 %v46, %v52
    %v61 = vsub.f32 %v47, %v53
    %v62 = vsub.f32 %v48, %v52
    %v63 = vsub.f32 %v49, %v53
    %v64 = vsub.f32 %v50, %v52
    %v65 = vsub.f32 %v51, %v53
    %v66 = vmul.f32 %v54, %v54
    %v67 = vmul.f32 %v55, %v55
    %v68 = vmul.f32 %v56, %v56
    %v69 = vmul.f32 %v57, %v57
    %v70 = vmul.f32 %v58, %v58
    %v71 = vmul.f32 %v59, %v59
    %v72 = vmul.f32 %v60, %v60
    %v73 = vmul.f32 %v61, %v61
    %v74 = vmul.f32 %v62, %v62
    %v75 = vmul.f32 %v63, %v63
    %v76 = vmul.f32 %v64, %v64
    %v77 = vmul.f32 %v65, %v65
    %v78 = vlaneseq
    %v79 = vshrl.u32 %v78, 7
    %v80 = vadd.s32 %v79, 8
    %vm81 = vcmp.lt.s32.totalorder %v79, 0
    %v82 = vsub.s32 0, %v79
    %v83 = vsel %vm81, %v82, %v79
    %v84 = vshrl.u32 %v83, 1
    %v85 = vand.u32 %v83, 1
    %v86 = vsub.s32 0, %v85
    %v87 = vsel %vm81, %v86, %v85
    %vm88 = vcmp.lt.s32.totalorder %v80, 0
    %v89 = vsub.s32 0, %v80
    %v90 = vsel %vm88, %v89, %v80
    %v91 = vshrl.u32 %v90, 1
    %v92 = vand.u32 %v90, 1
    %v93 = vsub.s32 0, %v92
    %v94 = vsel %vm88, %v93, %v92
    %vm95 = vcmp.ne.s32.totalorder %v87, 0
    %vm96 = vcmp.ne.s32.totalorder %v94, 0
    %vm97 = vcmp.lt.s32.totalorder %v87, 0
    %vm98 = vcmp.lt.s32.totalorder %v94, 0
    %vm99 = vmand %vm97, %vm95
    %vm100 = vmand %vm98, %vm96
    %v101 = vadd.s32 %v87, 2
    %v102 = vadd.s32 %v94, 2
    %v103 = vsel %vm99, %v101, %v87
    %v104 = vsel %vm100, %v102, %v94
    %vm105 = vcmp.eq.s32.totalorder %v103, 0
    %vm106 = vcmp.eq.s32.totalorder %v104, 0
    %v107 = vsel %vm105, 2.5, 1.0
    %v108 = vsel %vm106, 2.5, 1.0
    %v109 = vmul.f32 %v66, %v107
    %v110 = vmul.f32 %v67, %v108
    %v111 = vmul.f32 %v68, %v107
    %v112 = vmul.f32 %v69, %v108
    %v113 = vmul.f32 %v70, %v107
    %v114 = vmul.f32 %v71, %v108
    %v115 = vmul.f32 %v72, %v107
    %v116 = vmul.f32 %v73, %v108
    %v117 = vmul.f32 %v74, %v107
    %v118 = vmul.f32 %v75, %v108
    %v119 = vmul.f32 %v76, %v107
    %v120 = vmul.f32 %v77, %v108
    %vm121 = vcmask 1043456
    %v122 = vsel %vm121, %v110, 0.0
    %v123 = vadd.f32 %v109, %v122
    %v124 = vrot.slane %v123, 4
    %v125 = vadd.f32 %v123, %v124
    %v126 = vrot.slane %v125, 2
    %v127 = vadd.f32 %v125, %v126
    %v128 = vrot.slane %v127, 1
    %v129 = vadd.f32 %v127, %v128
    %v130 = vsel %vm121, %v112, 0.0
    %v131 = vadd.f32 %v111, %v130
    %v132 = vrot.slane %v131, 4
    %v133 = vadd.f32 %v131, %v132
    %v134 = vrot.slane %v133, 2
    %v135 = vadd.f32 %v133, %v134
    %v136 = vrot.slane %v135, 1
    %v137 = vadd.f32 %v135, %v136
    %v138 = vsel %vm121, %v114, 0.0
    %v139 = vadd.f32 %v113, %v138
    %v140 = vrot.slane %v139, 4
    %v141 = vadd.f32 %v139, %v140
    %v142 = vrot.slane %v141, 2
    %v143 = vadd.f32 %v141, %v142
    %v144 = vrot.slane %v143, 1
    %v145 = vadd.f32 %v143, %v144
    %v146 = vsel %vm121, %v116, 0.0
    %v147 = vadd.f32 %v115, %v146
    %v148 = vrot.slane %v147, 4
    %v149 = vadd.f32 %v147, %v148
    %v150 = vrot.slane %v149, 2
    %v151 = vadd.f32 %v149, %v150
    %v152 = vrot.slane %v151, 1
    %v153 = vadd.f32 %v151, %v152
    %v154 = vsel %vm121, %v118, 0.0
    %v155 = vadd.f32 %v117, %v154
    %v156 = vrot.slane %v155, 4
    %v157 = vadd.f32 %v155, %v156
    %v158 = vrot.slane %v157, 2
    %v159 = vadd.f32 %v157, %v158
    %v160 = vrot.slane %v159, 1
    %v161 = vadd.f32 %v159, %v160
    %v162 = vsel %vm121, %v120, 0.0
    %v163 = vadd.f32 %v119, %v162
    %v164 = vrot.slane %v163, 4
    %v165 = vadd.f32 %v163, %v164
    %v166 = vrot.slane %v165, 2
    %v167 = vadd.f32 %v165, %v166
    %v168 = vrot.slane %v167, 1
    %v169 = vadd.f32 %v167, %v168
    %v170 = vrcp.pop 12.0
    %v171 = vmul.f32 %v129, %v170
    %v172 = vmul.f32 %v137, %v170
    %v173 = vmul.f32 %v145, %v170
    %v174 = vmul.f32 %v153, %v170
    %v175 = vmul.f32 %v161, %v170
    %v176 = vmul.f32 %v169, %v170
    %v177 = vmul.f32 %v41, %v53
    %v178 = vmul.f32 %v43, %v53
    %v179 = vmul.f32 %v45, %v53
    %v180 = vmul.f32 %v47, %v53
    %v181 = vmul.f32 %v49, %v53
    %v182 = vmul.f32 %v51, %v53
    %v189 = vrot.slane %v177, 2
    %v190 = vrot.slane %v178, 2
    %v191 = vrot.slane %v179, 2
    %v192 = vrot.slane %v180, 2
    %v193 = vrot.slane %v181, 2
    %v194 = vrot.slane %v182, 2
    %vm201 = vcmask 1041408
    %v202 = vsel %vm201, %v189, 0.0
    %v203 = vrot.slane %v202, 4
    %v204 = vadd.f32 %v202, %v203
    %v205 = vrot.slane %v204, 2
    %v206 = vadd.f32 %v204, %v205
    %v207 = vrot.slane %v206, 1
    %v208 = vadd.f32 %v206, %v207
    %v209 = vsel %vm201, %v190, 0.0
    %v210 = vrot.slane %v209, 4
    %v211 = vadd.f32 %v209, %v210
    %v212 = vrot.slane %v211, 2
    %v213 = vadd.f32 %v211, %v212
    %v214 = vrot.slane %v213, 1
    %v215 = vadd.f32 %v213, %v214
    %v216 = vsel %vm201, %v191, 0.0
    %v217 = vrot.slane %v216, 4
    %v218 = vadd.f32 %v216, %v217
    %v219 = vrot.slane %v218, 2
    %v220 = vadd.f32 %v218, %v219
    %v221 = vrot.slane %v220, 1
    %v222 = vadd.f32 %v220, %v221
    %v223 = vsel %vm201, %v192, 0.0
    %v224 = vrot.slane %v223, 4
    %v225 = vadd.f32 %v223, %v224
    %v226 = vrot.slane %v225, 2
    %v227 = vadd.f32 %v225, %v226
    %v228 = vrot.slane %v227, 1
    %v229 = vadd.f32 %v227, %v228
    %v230 = vsel %vm201, %v193, 0.0
    %v231 = vrot.slane %v230, 4
    %v232 = vadd.f32 %v230, %v231
    %v233 = vrot.slane %v232, 2
    %v234 = vadd.f32 %v232, %v233
    %v235 = vrot.slane %v234, 1
    %v236 = vadd.f32 %v234, %v235
    %v237 = vsel %vm201, %v194, 0.0
    %v238 = vrot.slane %v237, 4
    %v239 = vadd.f32 %v237, %v238
    %v240 = vrot.slane %v239, 2
    %v241 = vadd.f32 %v239, %v240
    %v242 = vrot.slane %v241, 1
    %v243 = vadd.f32 %v241, %v242
    %v244 = vmul.f32 %v41, %v41
    %v245 = vmul.f32 %v43, %v43
    %v246 = vmul.f32 %v45, %v45
    %v247 = vmul.f32 %v47, %v47
    %v248 = vmul.f32 %v49, %v49
    %v249 = vmul.f32 %v51, %v51
    %v256 = vrot.slane %v244, 2
    %v257 = vrot.slane %v245, 2
    %v258 = vrot.slane %v246, 2
    %v259 = vrot.slane %v247, 2
    %v260 = vrot.slane %v248, 2
    %v261 = vrot.slane %v249, 2
    %v268 = vsel %vm201, %v256, 0.0
    %v269 = vrot.slane %v268, 4
    %v270 = vadd.f32 %v268, %v269
    %v271 = vrot.slane %v270, 2
    %v272 = vadd.f32 %v270, %v271
    %v273 = vrot.slane %v272, 1
    %v274 = vadd.f32 %v272, %v273
    %v275 = vsel %vm201, %v257, 0.0
    %v276 = vrot.slane %v275, 4
    %v277 = vadd.f32 %v275, %v276
    %v278 = vrot.slane %v277, 2
    %v279 = vadd.f32 %v277, %v278
    %v280 = vrot.slane %v279, 1
    %v281 = vadd.f32 %v279, %v280
    %v282 = vsel %vm201, %v258, 0.0
    %v283 = vrot.slane %v282, 4
    %v284 = vadd.f32 %v282, %v283
    %v285 = vrot.slane %v284, 2
    %v286 = vadd.f32 %v284, %v285
    %v287 = vrot.slane %v286, 1
    %v288 = vadd.f32 %v286, %v287
    %v289 = vsel %vm201, %v259, 0.0
    %v290 = vrot.slane %v289, 4
    %v291 = vadd.f32 %v289, %v290
    %v292 = vrot.slane %v291, 2
    %v293 = vadd.f32 %v291, %v292
    %v294 = vrot.slane %v293, 1
    %v295 = vadd.f32 %v293, %v294
    %v296 = vsel %vm201, %v260, 0.0
    %v297 = vrot.slane %v296, 4
    %v298 = vadd.f32 %v296, %v297
    %v299 = vrot.slane %v298, 2
    %v300 = vadd.f32 %v298, %v299
    %v301 = vrot.slane %v300, 1
    %v302 = vadd.f32 %v300, %v301
    %v303 = vsel %vm201, %v261, 0.0
    %v304 = vrot.slane %v303, 4
    %v305 = vadd.f32 %v303, %v304
    %v306 = vrot.slane %v305, 2
    %v307 = vadd.f32 %v305, %v306
    %v308 = vrot.slane %v307, 1
    %v309 = vadd.f32 %v307, %v308
    %v310 = vrsqrt.pop %v274
    %v311 = vmul.f32 %v274, %v310
    %vm312 = vcmp.eq.f32.partialorder %v274, inf
    %v313 = vsel %vm312, %v274, %v311
    %vm314 = vcmp.eq.f32.partialorder %v274, 0.0
    %v315 = vand.u32 %v274, 2147483648
    %v316 = vsel %vm314, %v315, %v313
    %v317 = vrsqrt.pop %v281
    %v318 = vmul.f32 %v281, %v317
    %vm319 = vcmp.eq.f32.partialorder %v281, inf
    %v320 = vsel %vm319, %v281, %v318
    %vm321 = vcmp.eq.f32.partialorder %v281, 0.0
    %v322 = vand.u32 %v281, 2147483648
    %v323 = vsel %vm321, %v322, %v320
    %v324 = vrsqrt.pop %v288
    %v325 = vmul.f32 %v288, %v324
    %vm326 = vcmp.eq.f32.partialorder %v288, inf
    %v327 = vsel %vm326, %v288, %v325
    %vm328 = vcmp.eq.f32.partialorder %v288, 0.0
    %v329 = vand.u32 %v288, 2147483648
    %v330 = vsel %vm328, %v329, %v327
    %v331 = vrsqrt.pop %v295
    %v332 = vmul.f32 %v295, %v331
    %vm333 = vcmp.eq.f32.partialorder %v295, inf
    %v334 = vsel %vm333, %v295, %v332
    %vm335 = vcmp.eq.f32.partialorder %v295, 0.0
    %v336 = vand.u32 %v295, 2147483648
    %v337 = vsel %vm335, %v336, %v334
    %v338 = vrsqrt.pop %v302
    %v339 = vmul.f32 %v302, %v338
    %vm340 = vcmp.eq.f32.partialorder %v302, inf
    %v341 = vsel %vm340, %v302, %v339
    %vm342 = vcmp.eq.f32.partialorder %v302, 0.0
    %v343 = vand.u32 %v302, 2147483648
    %v344 = vsel %vm342, %v343, %v341
    %v345 = vrsqrt.pop %v309
    %v346 = vmul.f32 %v309, %v345
    %vm347 = vcmp.eq.f32.partialorder %v309, inf
    %v348 = vsel %vm347, %v309, %v346
    %vm349 = vcmp.eq.f32.partialorder %v309, 0.0
    %v350 = vand.u32 %v309, 2147483648
    %v351 = vsel %vm349, %v350, %v348
    %v352 = vmul.f32 %v53, %v53
    %v354 = vrot.slane %v352, 2
    %v356 = vsel %vm201, %v354, 0.0
    %v357 = vrot.slane %v356, 4
    %v358 = vadd.f32 %v356, %v357
    %v359 = vrot.slane %v358, 2
    %v360 = vadd.f32 %v358, %v359
    %v361 = vrot.slane %v360, 1
    %v362 = vadd.f32 %v360, %v361
    %v363 = vrsqrt.pop %v362
    %v364 = vmul.f32 %v362, %v363
    %vm365 = vcmp.eq.f32.partialorder %v362, inf
    %v366 = vsel %vm365, %v362, %v364
    %vm367 = vcmp.eq.f32.partialorder %v362, 0.0
    %v368 = vand.u32 %v362, 2147483648
    %v369 = vsel %vm367, %v368, %v366
    %v370 = vmul.f32 %v316, %v369
    %v371 = vmul.f32 %v323, %v369
    %v372 = vmul.f32 %v330, %v369
    %v373 = vmul.f32 %v337, %v369
    %v374 = vmul.f32 %v344, %v369
    %v375 = vmul.f32 %v351, %v369
    %v376 = vmul.f32 %v370, 0.9961947
    %v377 = vmul.f32 %v371, 0.9961947
    %v378 = vmul.f32 %v372, 0.9961947
    %v379 = vmul.f32 %v373, 0.9961947
    %v380 = vmul.f32 %v374, 0.9961947
    %v381 = vmul.f32 %v375, 0.9961947
    %vm382 = vcmp.gt.f32.partialorder %v208, %v376
    %vm383 = vcmp.gt.f32.partialorder %v215, %v377
    %vm384 = vcmp.gt.f32.partialorder %v222, %v378
    %vm385 = vcmp.gt.f32.partialorder %v229, %v379
    %vm386 = vcmp.gt.f32.partialorder %v236, %v380
    %vm387 = vcmp.gt.f32.partialorder %v243, %v381
    %vm388 = vcmp.le.f32.partialorder %v208, %v370
    %vm389 = vcmp.le.f32.partialorder %v215, %v371
    %vm390 = vcmp.le.f32.partialorder %v222, %v372
    %vm391 = vcmp.le.f32.partialorder %v229, %v373
    %vm392 = vcmp.le.f32.partialorder %v236, %v374
    %vm393 = vcmp.le.f32.partialorder %v243, %v375
    %vm394 = vmand %vm382, %vm388
    %vm395 = vmand %vm383, %vm389
    %vm396 = vmand %vm384, %vm390
    %vm397 = vmand %vm385, %vm391
    %vm398 = vmand %vm386, %vm392
    %vm399 = vmand %vm387, %vm393
    %v400 = vsel %vm394, 1, 0
    %v401 = vsel %vm395, 1, 0
    %v402 = vsel %vm396, 1, 0
    %v403 = vsel %vm397, 1, 0
    %v404 = vsel %vm398, 1, 0
    %v405 = vsel %vm399, 1, 0
    %v406 = vcvt.s32.f32 %v400
    %v407 = vcvt.s32.f32 %v401
    %v408 = vcvt.s32.f32 %v402
    %v409 = vcvt.s32.f32 %v403
    %v410 = vcvt.s32.f32 %v404
    %v411 = vcvt.s32.f32 %v405
    %v418 = vrot.slane %v407, 7
    %vm419 = vcmask 1041409
    %v420 = vsel %vm419, %v418, %v406
    %v421 = vrot.slane %v408, 6
    %vm422 = vcmask 1042434
    %v423 = vsel %vm422, %v421, %v420
    %v424 = vrot.slane %v409, 5
    %vm425 = vcmask 1043459
    %v426 = vsel %vm425, %v424, %v423
    %v427 = vrot.slane %v410, 4
    %vm428 = vcmask 1044484
    %v429 = vsel %vm428, %v427, %v426
    %v430 = vrot.slane %v411, 3
    %vm431 = vcmask 1045509
    %v432 = vsel %vm431, %v430, %v429
    %vm434 = vcmask 1045504
    %v435 = vsel %vm434, %v432, 0.0
    %v436 = vrot.slane %v435, 4
    %v437 = vadd.f32 %v435, %v436
    %v438 = vrot.slane %v437, 2
    %v439 = vadd.f32 %v437, %v438
    %v440 = vrot.slane %v439, 1
    %v441 = vadd.f32 %v439, %v440
    %vm442 = vcmp.eq.f32.partialorder %v441, 0.0
    %vm443 = vcmp.le.f32.partialorder %v369, 0.1
    %v444 = vsel %vm442, 1, 0
    %v445 = vlaneseq
    %v446 = vshrl.u32 %v445, 7
    %v447 = vsub.s32 0, %v446
    %v448 = vrot.slane %v444, %v447
    %vm449 = vcmp.eq.s32.totalorder %v448, 1
    %vm450 = vmor %vm394, %vm449
    %vm451 = vmor %vm395, %vm449
    %vm452 = vmor %vm396, %vm449
    %vm453 = vmor %vm397, %vm449
    %vm454 = vmor %vm398, %vm449
    %vm455 = vmor %vm399, %vm449
    %v456 = vsel %vm443, 1, 0
    %vm457 = vcmp.eq.s32.totalorder %v456, 1
    %vm458 = vmor %vm450, %vm457
    %vm459 = vmor %vm451, %vm457
    %vm460 = vmor %vm452, %vm457
    %vm461 = vmor %vm453, %vm457
    %vm462 = vmor %vm454, %vm457
    %vm463 = vmor %vm455, %vm457
    %v464 = vsel %vm458, 1.0, 10000.0
    %v465 = vsel %vm459, 1.0, 10000.0
    %v466 = vsel %vm460, 1.0, 10000.0
    %v467 = vsel %vm461, 1.0, 10000.0
    %v468 = vsel %vm462, 1.0, 10000.0
    %v469 = vsel %vm463, 1.0, 10000.0
    %v470 = vmul.f32 %v171, %v464
    %v471 = vmul.f32 %v172, %v465
    %v472 = vmul.f32 %v173, %v466
    %v473 = vmul.f32 %v174, %v467
    %v474 = vmul.f32 %v175, %v468
    %v475 = vmul.f32 %v176, %v469
    %vm476 = vcmask 1040384
    %v477 = vsel %vm476, %v470, inf
    %v478 = vsel %vm476, %v471, inf
    %v479 = vsel %vm476, %v472, inf
    %v480 = vsel %vm476, %v473, inf
    %v481 = vsel %vm476, %v474, inf
    %v482 = vmin.f32 %v477, %v481
    %v483 = vsel %vm476, %v475, inf
    %v484 = vmin.f32 %v478, %v483
    %v485 = vmin.f32 %v482, %v484
    %v486 = vmin.f32 %v479, %v480
    %v487 = vmin.f32 %v485, %v486
    %488 = vst [vmem:[#allocation7] sm:$0x1] %v487
    // Predicated region
    $region18: #{tpu_custom_call.1} parent=1 // pred_check
      _
    $region19: #{tpu_custom_call.1} parent=1 // pred_check_branch
      %490 = sbr.rel (0) target = $region21
    $region20: #{tpu_custom_call.1} parent=1 // pred_region
      %s492 = ssub.s32 16, 16
      %493 = vsyncadd [#allocation4], %s492
      %s495 = sshll.u32 [#allocation7], 4
      %s496 = int_to_ptr.vmem [resolvable:$true] %s495
      %498 = dma.vmem_to_hbm [thread:$0]  %s496, 16, %s2, [#allocation4]
    $region21: #{tpu_custom_call.1} parent=1 // pred_fallthru
      _
    // Predicated region
    $region22: #{tpu_custom_call.1} parent=1 // pred_check
      _
    $region23: #{tpu_custom_call.1} parent=1 // pred_check_branch
      %500 = sbr.rel (0) target = $region25
    $region24: #{tpu_custom_call.1} parent=1 // pred_region
      %501 = dma.done [#allocation4], 16
    $region25: #{tpu_custom_call.1} parent=1 // pred_fallthru
      _
    %502 = vsyncpa [#allocation3], 1
    %503 = vsyncpa [#allocation6], 1
    %504 = vsyncpa [#allocation4], 1

</llo_original>
